<compile_context>
chip_gen: v7x
topology: tpu7x:2x2x1
jax: 0.10.0
libtpu: 0.0.40
codegen_flags: <defaults>
</compile_context>

<pallas_src>
import functools

import jax
import jax.numpy as jnp
from jax.experimental import pallas as pl
from jax.experimental.pallas import tpu as pltpu

BN_EPS = 1e-5
_MiB = 1024 * 1024


def _srm_kernel(x_ref, p_ref, o_ref, *, hw):
    """One (channel-tile, batch) grid step.

    x_ref: (1, TC, HW) lane-dense input block.
    p_ref: (TC, 3) folded CFC+BN params [a0, a1, b].
    o_ref: (1, TC, HW) output block.
    """
    x = x_ref[0]                                   # (TC, HW), input dtype
    xf = x.astype(jnp.float32)

    # Two-pass statistics (XLU lane reductions), f32 accumulation.
    mean = jnp.sum(xf, axis=1, keepdims=True) * (1.0 / hw)        # (TC, 1)
    d = xf - mean
    # torch.Tensor.std is unbiased (divides by N-1); HW == 1 -> NaN, matching torch.
    inv_nm1 = (1.0 / (hw - 1)) if hw > 1 else float("nan")
    std = jnp.sqrt(jnp.sum(d * d, axis=1, keepdims=True) * inv_nm1)

    # CFC (grouped conv1d, k=2) with eval-mode BatchNorm folded in:
    #   z = a0*mean + a1*std + b ;  g = sigmoid(z)
    p = p_ref[...].astype(jnp.float32)             # (TC, 3)
    z = p[:, 0:1] * mean + p[:, 1:2] * std + p[:, 2:3]
    g = jax.nn.sigmoid(z)                          # (TC, 1), f32

    # Recalibrate in f32 (matches reference), cast once on the store.
    o_ref[0] = (xf * g).astype(o_ref.dtype)


def _device_vmem_capacity_bytes():
    """Trace-time VMEM capacity query with a conservative fallback."""
    try:
        info = pltpu.get_tpu_info()
        cap = int(getattr(info, "vmem_capacity_bytes"))
        if cap > 0:
            return cap
    except Exception:
        pass
    return 64 * _MiB  # v7x per-TC capacity: safe lower bound.


def _sublane_multiple(itemsize):
    # f32 -> 8, bf16 -> 16, int8/fp8 -> 32 (sub-32-bit dtypes pack along sublanes).
    return max(8, 32 // max(itemsize, 1))


def _pick_channel_tile(C, HW, itemsize, budget_bytes):
    """Largest channel tile whose working set fits the per-step VMEM budget."""
    sub = _sublane_multiple(itemsize)
    # Per-channel VMEM bytes:
    #   2 double-buffered input rows + 2 output rows (itemsize each),
    #   ~3 f32 working temps inside the kernel (xf, centered diff, f32 product),
    #   plus the padded (tc,3)->(tc,128) f32 params block (double-buffered).
    per_chan = HW * (4 * itemsize + 12) + 2 * 128 * 4
    tc = int(budget_bytes // max(per_chan, 1))
    if tc >= C:
        tc = C
    else:
        tc = max(sub, (tc // sub) * sub)
    return tc, per_chan, sub


def srm_layer(x, cfc_weight, bn_gamma, bn_beta, bn_mean, bn_var):
    """SRM forward. x: (B, C, H, W); cfc_weight: (C, 2); bn_*: (C,). BN eval mode."""
    B, C, H, W = x.shape
    HW = H * W
    itemsize = x.dtype.itemsize

    # Fold eval-mode BatchNorm into the CFC weights:
    #   scale = gamma / sqrt(running_var + eps)
    #   z_hat = (w0*mean + w1*std - r_mean) * scale + beta = a0*mean + a1*std + b
    scale = bn_gamma * jax.lax.rsqrt(bn_var + BN_EPS)
    a0 = cfc_weight[:, 0] * scale
    a1 = cfc_weight[:, 1] * scale
    bias = bn_beta - bn_mean * scale
    params = jnp.stack([a0, a1, bias], axis=1).astype(jnp.float32)  # (C, 3)

    # Lane-dense layout: (B, C, H*W).  Zero-copy reshape for contiguous NCHW.
    # NOTE: most efficient when H*W is a multiple of 128; smaller / unaligned
    # HW still works (HW is the full last dim) but wastes part of each vreg/DMA.
    x3 = x.reshape(B, C, HW)

    # Generation-aware VMEM budgeting (v5e/v6e: 128 MiB -> 96 MiB limit;
    # v7x: 64 MiB per TC -> 48 MiB limit).  Budget is the per-step working set.
    cap = _device_vmem_capacity_bytes()
    vmem_limit = min(int(cap * 0.75), 96 * _MiB)
    budget = vmem_limit // 2

    tc, per_chan, sub = _pick_channel_tile(C, HW, itemsize, budget)

    # If B == 1 and a single tile would cover all of C, split the channel axis
    # so the grid has >= 2 parallel steps (both TensorCores busy on v7x).
    if B == 1 and tc >= C and C >= 2 * sub:
        half = (C + 1) // 2
        tc = max(sub, ((half + sub - 1) // sub) * sub)
        if tc >= C:
            tc = max(sub, C - sub)

    # Floor fix: for huge H*W even the minimum tile can exceed the budget;
    # raise the limit toward physical capacity instead of VMEM-OOMing.
    needed = per_chan * tc + 2 * _MiB
    if needed > vmem_limit:
        vmem_limit = min(max(needed, vmem_limit), max(cap - 4 * _MiB, needed))
        if per_chan * sub + 2 * _MiB > cap - 4 * _MiB:
            # TODO(synk): fall back to splitting HW over a third "arbitrary"
            # grid axis with f32 sum / sum-sq accumulators + a second scale pass.
            raise ValueError(
                f"SRM channel tile does not fit in VMEM (HW={HW}, "
                f"per-channel bytes={per_chan}, capacity={cap})."
            )

    n_ct = pl.cdiv(C, tc)

    # Grid (channel_tile, batch): the params block index is constant along the
    # inner batch axis, so its (small, padded) block is not re-fetched per b.
    x_index = lambda c, b: (b, c, 0)
    x_spec = pl.BlockSpec((1, tc, HW), x_index)
    # Deeper buffering hides DMA latency only when per-step blocks are tiny
    # and there are many grid steps; keep default double-buffering otherwise.
    if tc * HW * itemsize < 512 * 1024 and n_ct * B >= 8 and hasattr(pl, "Buffered"):
        try:
            x_spec = pl.BlockSpec((1, tc, HW), x_index,
                                  pipeline_mode=pl.Buffered(3))
        except TypeError:
            x_spec = pl.BlockSpec((1, tc, HW), x_index)

    kernel = functools.partial(_srm_kernel, hw=HW)
    cost = pl.CostEstimate(
        flops=6 * B * C * HW,
        transcendentals=2 * B * C,
        bytes_accessed=2 * B * C * HW * itemsize + C * 3 * 4,
    )

    out3 = pl.pallas_call(
        kernel,
        out_shape=jax.ShapeDtypeStruct((B, C, HW), x.dtype),
        grid_spec=pltpu.PrefetchScalarGridSpec(
            num_scalar_prefetch=0,
            grid=(n_ct, B),
            in_specs=[
                x_spec,
                pl.BlockSpec((tc, 3), lambda c, b: (c, 0)),
            ],
            out_specs=pl.BlockSpec((1, tc, HW), x_index),
        ),
        compiler_params=pltpu.CompilerParams(
            dimension_semantics=("parallel", "parallel"),
            vmem_limit_bytes=int(vmem_limit),
        ),
        cost_estimate=cost,
    )(x3, params)

    return out3.reshape(B, C, H, W)


def srm_reference(x, cfc_weight, bn_gamma, bn_beta, bn_mean, bn_var):
    """Pure-JAX reference mirroring the PyTorch forward (BN in eval mode)."""
    B, C, H, W = x.shape
    xf = x.reshape(B, C, -1).astype(jnp.float32)
    mean = xf.mean(-1, keepdims=True)
    std = jnp.sqrt(((xf - mean) ** 2).sum(-1, keepdims=True) / (H * W - 1))
    z = cfc_weight[None, :, 0:1] * mean + cfc_weight[None, :, 1:2] * std
    z_hat = (z - bn_mean[None, :, None]) * jax.lax.rsqrt(
        bn_var[None, :, None] + BN_EPS
    ) * bn_gamma[None, :, None] + bn_beta[None, :, None]
    g = jax.nn.sigmoid(z_hat).reshape(B, C, 1, 1)
    return (xf.reshape(B, C, H, W) * g).astype(x.dtype)


if __name__ == "__main__":
    key = jax.random.PRNGKey(0)
    k_x, k_w = jax.random.split(key)

    B, C, H, W = 2, 4, 16, 16
    x = jax.random.normal(k_x, (B, C, H, W), dtype=jnp.float32)

    # Conv1d(channel, channel, k=2, groups=channel, bias=False): weight (C,1,2) -> (C,2)
    cfc_weight = 0.1 * jax.random.normal(k_w, (C, 2), dtype=jnp.float32)
    # BatchNorm1d default params / running stats (eval mode).
    bn_gamma = jnp.ones((C,), jnp.float32)
    bn_beta = jnp.zeros((C,), jnp.float32)
    bn_mean = jnp.zeros((C,), jnp.float32)
    bn_var = jnp.ones((C,), jnp.float32)

    out = srm_layer(x, cfc_weight, bn_gamma, bn_beta, bn_mean, bn_var)
    out = jax.block_until_ready(out)

    ref = srm_reference(x, cfc_weight, bn_gamma, bn_beta, bn_mean, bn_var)
    assert out.shape == (B, C, H, W)
    assert jnp.allclose(out, ref, atol=1e-5, rtol=1e-5), "mismatch vs reference"

    print("KERNEL_OK")
</pallas_src>

<mosaic_0001>
module attributes {stable_mosaic.version = 11 : i64} {
  func.func @_srm_kernel(%arg0: i32, %arg1: i32, %arg2: memref<1x4x256xf32, #tpu.memory_space<vmem>>, %arg3: memref<4x3xf32, #tpu.memory_space<vmem>>, %arg4: memref<1x4x256xf32, #tpu.memory_space<vmem>>) attributes {dimension_semantics = [#tpu.dimension_semantics<parallel>, #tpu.dimension_semantics<parallel>], iteration_bounds = array<i64: 1, 2>, scalar_prefetch = 0 : i64, scratch_operands = 0 : i64, tpu.core_type = #tpu.core_type<tc>, window_params = [{transform_indices = @transform_0, window_bounds = array<i64: 1, 4, 256>}, {transform_indices = @transform_1, window_bounds = array<i64: 4, 3>}, {transform_indices = @transform_2, window_bounds = array<i64: 1, 4, 256>}]} {
    %c0 = arith.constant 0 : index
    %c0_0 = arith.constant 0 : index
    %c0_1 = arith.constant 0 : index
    %0 = vector.load %arg2[%c0, %c0_0, %c0_1] : memref<1x4x256xf32, #tpu.memory_space<vmem>>, vector<1x4x256xf32>
    %1 = vector.shape_cast %0 : vector<1x4x256xf32> to vector<4x256xf32>
    %cst = arith.constant dense<0.000000e+00> : vector<4xf32>
    %2 = vector.multi_reduction <add>, %1, %cst [1] : vector<4x256xf32> to vector<4xf32>
    %3 = vector.shape_cast %2 : vector<4xf32> to vector<4x1xf32>
    %cst_2 = arith.constant 3.906250e-03 : f32
    %4 = vector.broadcast %cst_2 : f32 to vector<4x1xf32>
    %5 = arith.mulf %3, %4 : vector<4x1xf32>
    %6 = vector.broadcast %5 : vector<4x1xf32> to vector<4x256xf32>
    %7 = arith.subf %1, %6 : vector<4x256xf32>
    %8 = arith.mulf %7, %7 : vector<4x256xf32>
    %cst_3 = arith.constant dense<0.000000e+00> : vector<4xf32>
    %9 = vector.multi_reduction <add>, %8, %cst_3 [1] : vector<4x256xf32> to vector<4xf32>
    %10 = vector.shape_cast %9 : vector<4xf32> to vector<4x1xf32>
    %cst_4 = arith.constant 0.00392156886 : f32
    %11 = vector.broadcast %cst_4 : f32 to vector<4x1xf32>
    %12 = arith.mulf %10, %11 : vector<4x1xf32>
    %13 = math.sqrt %12 : vector<4x1xf32>
    %c0_5 = arith.constant 0 : index
    %c0_6 = arith.constant 0 : index
    %14 = vector.load %arg3[%c0_5, %c0_6] : memref<4x3xf32, #tpu.memory_space<vmem>>, vector<4x3xf32>
    %15 = vector.extract_strided_slice %14 {offsets = [0, 0], sizes = [4, 1], strides = [1, 1]} : vector<4x3xf32> to vector<4x1xf32>
    %16 = arith.mulf %15, %5 : vector<4x1xf32>
    %17 = vector.extract_strided_slice %14 {offsets = [0, 1], sizes = [4, 1], strides = [1, 1]} : vector<4x3xf32> to vector<4x1xf32>
    %18 = arith.mulf %17, %13 : vector<4x1xf32>
    %19 = arith.addf %16, %18 : vector<4x1xf32>
    %20 = vector.extract_strided_slice %14 {offsets = [0, 2], sizes = [4, 1], strides = [1, 1]} : vector<4x3xf32> to vector<4x1xf32>
    %21 = arith.addf %19, %20 : vector<4x1xf32>
    %22 = arith.negf %21 : vector<4x1xf32>
    %23 = math.exp %22 : vector<4x1xf32>
    %cst_7 = arith.constant 1.000000e+00 : f32
    %24 = vector.broadcast %cst_7 : f32 to vector<4x1xf32>
    %25 = arith.addf %24, %23 : vector<4x1xf32>
    %26 = arith.divf %24, %25 : vector<4x1xf32>
    %27 = vector.broadcast %26 : vector<4x1xf32> to vector<4x256xf32>
    %28 = arith.mulf %1, %27 : vector<4x256xf32>
    %c0_8 = arith.constant 0 : index
    %c0_9 = arith.constant 0 : index
    %c0_10 = arith.constant 0 : index
    %29 = vector.load %arg4[%c0_8, %c0_9, %c0_10] : memref<1x4x256xf32, #tpu.memory_space<vmem>>, vector<1x4x256xf32>
    %30 = vector.shape_cast %29 : vector<1x4x256xf32> to vector<4x256xf32>
    %31 = vector.shape_cast %28 : vector<4x256xf32> to vector<1x4x256xf32>
    tpu.vector_store %arg4[%c0_8, %c0_9, %c0_10], %31 {strides = array<i32>} : memref<1x4x256xf32, #tpu.memory_space<vmem>>, vector<1x4x256xf32>,
    return
  }
  func.func @transform_0(%arg0: i32, %arg1: i32) -> (i32, i32, i32) {
    %c0_i32 = arith.constant 0 : i32
    %c0_i32_0 = arith.constant 0 : i32
    return %arg1, %arg0, %c0_i32 : i32, i32, i32
  }
  func.func @transform_1(%arg0: i32, %arg1: i32) -> (i32, i32) {
    %c0_i32 = arith.constant 0 : i32
    %c0_i32_0 = arith.constant 0 : i32
    return %arg0, %c0_i32 : i32, i32
  }
  func.func @transform_2(%arg0: i32, %arg1: i32) -> (i32, i32, i32) {
    %c0_i32 = arith.constant 0 : i32
    %c0_i32_0 = arith.constant 0 : i32
    return %arg1, %arg0, %c0_i32 : i32, i32, i32
  }
}

</mosaic_0001>

<llo_original>
// kernel: tpu_custom_call.1
$region0: #{tpu_custom_call.1}
  #allocation0 [shape = 'u32[]', space=smem, size = 0x4, offset = 0x4, fixed_abs, tag = 'smem constant byte address 0x4 - core index']
  #allocation1 [shape = 'u32[144,128]{1,0:T(1,128)}', space=vmem, size = 0x12000, scoped, tag = 'internal scratch']
  %s0 = inlined_call_operand.hbm [shape: f32[2,4,256], index: 0, kind: input, shape index: {}]
  %s1 = inlined_call_operand.hbm [shape: f32[4,3], index: 1, kind: input, shape index: {}]
  %s2 = inlined_call_operand.hbm [shape: f32[2,4,256], index: 2, kind: output, shape index: {}]
  %s3 = sld [smem:[#allocation0]]
  $region49: #{tpu_custom_call.1} parent=0
    _
  %s5 = ssub.s32 1, %s3
  %s6 = scalar_select 0, %s5, %s3
  $region1: #{tpu_custom_call.1} parent=0
    #allocation2 [shape = 'u8[8192]{0}', space=vmem, size = 0x2000, scoped, tag = 'input window, operand 0']
    #allocation3 [shape = 's32[2]{0}', space=sflag, size = 0x8, scoped, tag = 'scoped memory for tpu_custom_call.1']
    #allocation4 [shape = 's32[2]{0}', space=sflag, size = 0x8, scoped, tag = 'scoped memory for tpu_custom_call.1']
    #allocation5 [shape = 'u8[2048]{0}', space=vmem, size = 0x800, scoped, tag = 'input window, operand 1, single buffered']
    #allocation6 [shape = 's32[1]{0}', space=sflag, size = 0x4, scoped, tag = 'scoped memory for tpu_custom_call.1']
    #allocation7 [shape = 'u8[8192]{0}', space=vmem, size = 0x2000, scoped, tag = 'output window, operand 0']
    %7 = vsyncpa [#allocation3], 0
    %s8 = scalar_lea.sflag [#allocation3], 1
    %9 = vsyncpa %s8, 0
    %10 = vsyncpa [#allocation6], 0
    %11 = vsyncpa [#allocation4], 0
    %s12 = scalar_lea.sflag [#allocation4], 1
    %13 = vsyncpa %s12, 0
    loop: start=0, step=1, limit=4
    $region2: #{tpu_custom_call.1} parent=1 // loop_pre_header
      _
    $region3: #{tpu_custom_call.1} parent=1 // loop_header
      %s15 = sphi 0, %s19
      %p16 = scmp.ge.s32.totalorder %s15, 4
      %s22 = sphi 0, %s34
      %s23 = sphi 0, %s30
      %s24 = sphi 0, %s22
      %s25 = sphi 0, %s23
      %s26 = sphi 0, %s24
      %s27 = sphi 0, %s25
      %s39 = sphi 0, %s41
      %s42 = sphi 0, %s39
      %s43 = sphi 0, %s42
      %s59 = sphi 0, %s43
      %s65 = sphi 0, %s67
      %s68 = sphi 0, %s65
      %s69 = sphi 0, %s68
      %s85 = sphi 0, %s69
      %s93 = sphi 0, %s95
      %s96 = sphi 0, %s93
      %s97 = sphi 0, %s96
      %s113 = sphi 0, %s97
    $region4: #{tpu_custom_call.1} parent=1 // loop_header_branch
      %18 = sbr.rel (%p16) target = $region8
    $region5: #{tpu_custom_call.1} parent=1 // loop_body
      %s20 = ssub.s32 %s15, 1
      %s21 = ssub.s32 %s15, 2
      %s28 = sadd.s32 1, %s23
      %p29 = scmp.ge.s32.totalorder %s28, 2
      %s30 = scalar_select %p29, 0, %s28
      %s31 = sadd.s32 1, %s22
      %s32 = scalar_select %p29, %s31, %s22
      %p33 = scmp.ge.s32.totalorder %s32, 1
      %s34 = scalar_select %p33, 0, %s32
      %s35 = ssub.s32 %s23, %s30
      %s36 = ssub.s32 %s22, %s34
      %s37 = sor.u32 %s35, %s36
      %p38 = scmp.eq.s32.totalorder %s37, 0
      %s40 = sadd.s32 %s39, 1
      %s41 = scalar_select %p38, %s39, %s40
      %p44 = pneg %p38
      %p45 = scmp.eq.s32.totalorder %s15, 1
      %p46 = por %p44, %p45
      %p47 = scmp.ne.s32.totalorder %s39, %s42
      %p48 = scmp.eq.s32.totalorder %s15, 0
      %p49 = por %p47, %p48
      %p50 = scmp.ne.s32.totalorder %s39, %s42
      %p51 = scmp.eq.s32.totalorder %s20, 1
      %p52 = por %p50, %p51
      %p53 = scmp.ne.s32.totalorder %s42, %s43
      %p54 = scmp.eq.s32.totalorder %s20, 0
      %p55 = por %p53, %p54
      %p56 = scmp.ne.s32.totalorder %s42, %s43
      %p57 = scmp.eq.s32.totalorder %s21, 1
      %p58 = por %p56, %p57
      %p60 = scmp.ne.s32.totalorder %s43, %s59
      %p61 = scmp.eq.s32.totalorder %s21, 0
      %p62 = por %p60, %p61
      %s63 = ssub.s32 %s22, %s34
      %p64 = scmp.eq.s32.totalorder %s63, 0
      %s66 = sadd.s32 %s65, 1
      %s67 = scalar_select %p64, %s65, %s66
      %p70 = pneg %p64
      %p71 = scmp.eq.s32.totalorder %s15, 1
      %p72 = por %p70, %p71
      %p73 = scmp.ne.s32.totalorder %s65, %s68
      %p74 = scmp.eq.s32.totalorder %s15, 0
      %p75 = por %p73, %p74
      %p76 = scmp.ne.s32.totalorder %s65, %s68
      %p77 = scmp.eq.s32.totalorder %s20, 1
      %p78 = por %p76, %p77
      %p79 = scmp.ne.s32.totalorder %s68, %s69
      %p80 = scmp.eq.s32.totalorder %s20, 0
      %p81 = por %p79, %p80
      %p82 = scmp.ne.s32.totalorder %s68, %s69
      %p83 = scmp.eq.s32.totalorder %s21, 1
      %p84 = por %p82, %p83
      %p86 = scmp.ne.s32.totalorder %s69, %s85
      %p87 = scmp.eq.s32.totalorder %s21, 0
      %p88 = por %p86, %p87
      %s89 = ssub.s32 %s23, %s30
      %s90 = ssub.s32 %s22, %s34
      %s91 = sor.u32 %s89, %s90
      %p92 = scmp.eq.s32.totalorder %s91, 0
      %s94 = sadd.s32 %s93, 1
      %s95 = scalar_select %p92, %s93, %s94
      %p98 = pneg %p92
      %p99 = scmp.eq.s32.totalorder %s15, 1
      %p100 = por %p98, %p99
      %p101 = scmp.ne.s32.totalorder %s93, %s96
      %p102 = scmp.eq.s32.totalorder %s15, 0
      %p103 = por %p101, %p102
      %p104 = scmp.ne.s32.totalorder %s93, %s96
      %p105 = scmp.eq.s32.totalorder %s20, 1
      %p106 = por %p104, %p105
      %p107 = scmp.ne.s32.totalorder %s96, %s97
      %p108 = scmp.eq.s32.totalorder %s20, 0
      %p109 = por %p107, %p108
      %p110 = scmp.ne.s32.totalorder %s96, %s97
      %p111 = scmp.eq.s32.totalorder %s21, 1
      %p112 = por %p110, %p111
      %p114 = scmp.ne.s32.totalorder %s97, %s113
      %p115 = scmp.eq.s32.totalorder %s21, 0
      %p116 = por %p114, %p115
      %p117 = scmp.le.s32.totalorder 1, %s15
      %p118 = scmp.lt.s32.totalorder %s15, 3
      %p119 = pnand %p117, %p118
      %p120 = pneg %p119
      // Predicated region
      $region9: #{tpu_custom_call.1} parent=5 // pred_check
        _
      $region10: #{tpu_custom_call.1} parent=5 // pred_check_branch
        %122 = sbr.rel (%p119) target = $region12
      $region11: #{tpu_custom_call.1} parent=5 // pred_region
        %s123 = ssub.s32 %s15, 1
        // Predicated region
        $region13: #{tpu_custom_call.1} parent=11 // pred_check
          %p124 = pneg %p81
        $region14: #{tpu_custom_call.1} parent=11 // pred_check_branch
          %126 = sbr.rel (%p124) target = $region16
        $region15: #{tpu_custom_call.1} parent=11 // pred_region
          %s128 = ssub.s32 64, 64
          %129 = vsyncadd [#allocation6], %s128
          %s130 = smul.addr %s24, 64
          %s131 = scalar_lea.hbm %s1, %s130
          %s133 = sshll.u32 [#allocation5], 4
          %s134 = int_to_ptr.vmem [resolvable:$true] %s133
          %136 = dma.hbm_to_vmem [thread:$0]  %s131, 64, %s134, [#allocation6]
        $region16: #{tpu_custom_call.1} parent=11 // pred_fallthru
          _
      $region12: #{tpu_custom_call.1} parent=5 // pred_fallthru
        _
      %p137 = scmp.lt.s32.totalorder %s15, 2
      // Predicated region
      $region17: #{tpu_custom_call.1} parent=5 // pred_check
        %p138 = pneg %p137
      $region18: #{tpu_custom_call.1} parent=5 // pred_check_branch
        %140 = sbr.rel (%p138) target = $region20
      $region19: #{tpu_custom_call.1} parent=5 // pred_region
        // Predicated region
        $region21: #{tpu_custom_call.1} parent=19 // pred_check
          %p141 = pneg %p49
        $region22: #{tpu_custom_call.1} parent=19 // pred_check_branch
          %143 = sbr.rel (%p141) target = $region24
        $region23: #{tpu_custom_call.1} parent=19 // pred_region
          %s144 = sand.u32 %s39, 1
          %s145 = scalar_lea.sflag [#allocation3], %s144
          %s146 = sand.u32 %s39, 1
          %s147 = smul.addr %s146, 8
          %s148 = scalar_lea.vmem [#allocation2], %s147
          %s150 = ssub.s32 128, 128
          %151 = vsyncadd %s145, %s150
          %s152 = smul.addr %s22, 2
          %s153 = smul.addr %s23, 2
          %s154 = sadd.s32 %s152, %s153
          %s155 = smul.addr %s154, 64
          %s156 = scalar_lea.hbm %s0, %s155
          %s158 = sshll.u32 %s148, 4
          %s159 = int_to_ptr.vmem [resolvable:$true] %s158
          %161 = dma.hbm_to_vmem [thread:$0]  %s156, 128, %s159, %s145
        $region24: #{tpu_custom_call.1} parent=19 // pred_fallthru
          _
      $region20: #{tpu_custom_call.1} parent=5 // pred_fallthru
        _
      %p162 = scmp.le.s32.totalorder 1, %s15
      %p163 = scmp.lt.s32.totalorder %s15, 3
      %p164 = pnand %p162, %p163
      %p165 = pneg %p164
      // Predicated region
      $region25: #{tpu_custom_call.1} parent=5 // pred_check
        _
      $region26: #{tpu_custom_call.1} parent=5 // pred_check_branch
        %167 = sbr.rel (%p164) target = $region28
      $region27: #{tpu_custom_call.1} parent=5 // pred_region
        %s168 = ssub.s32 %s15, 1
        %s169 = sand.u32 %s42, 1
        %s170 = scalar_lea.sflag [#allocation3], %s169
        %s171 = sand.u32 %s42, 1
        %s172 = smul.addr %s171, 8
        %s173 = scalar_lea.vmem [#allocation2], %s172
        // Predicated region
        $region29: #{tpu_custom_call.1} parent=27 // pred_check
          %p174 = pneg %p55
        $region30: #{tpu_custom_call.1} parent=27 // pred_check_branch
          %176 = sbr.rel (%p174) target = $region32
        $region31: #{tpu_custom_call.1} parent=27 // pred_region
          %177 = dma.done %s170, 128
        $region32: #{tpu_custom_call.1} parent=27 // pred_fallthru
          _
        // Predicated region
        $region33: #{tpu_custom_call.1} parent=27 // pred_check
          %p178 = pneg %p81
        $region34: #{tpu_custom_call.1} parent=27 // pred_check_branch
          %180 = sbr.rel (%p178) target = $region36
        $region35: #{tpu_custom_call.1} parent=27 // pred_region
          %181 = dma.done [#allocation6], 64
        $region36: #{tpu_custom_call.1} parent=27 // pred_fallthru
          _
        %s182 = sand.u32 %s42, 1
        %s183 = scalar_lea.sflag [#allocation3], %s182
        %s184 = sand.u32 %s42, 1
        %s185 = smul.addr %s184, 8
        %s186 = scalar_lea.vmem [#allocation2], %s185
        %p187 = pneg %p55
        %p188 = pneg %p52
        %p189 = pneg %p81
        %p190 = pneg %p78
        %p191 = pneg %p109
        %p192 = pneg %p106
        %s193 = sand.u32 %s96, 1
        %s194 = scalar_lea.sflag [#allocation4], %s193
        %s195 = sand.u32 %s96, 1
        %s196 = smul.addr %s195, 8
        %s197 = scalar_lea.vmem [#allocation7], %s196
        %v198 = vld [vmem:[%s173] sm:$0xff]
        %v200 = vcombine.high %v198, %v198
        %vm202 = vcmask 1043456
        %v203 = vsel %vm202, %v198, 0.0
        %v204 = vsel %vm202, %v200, 0.0
        %v205 = vadd.f32 %v203, %v204
        %206 = vadd.xlane.f32.xlu0 %v205
        %v207 = vpop.xlane.xlu0 %206
        %v208 = vmul.f32 %v207, 0.00390625
        %v211 = vunpack.c.l.s4 839922192
        %v212 = vunpack.c.0.s8 %v211
        %v213 = vlaneseq
        %v214 = vshrl.u32 %v213, 7
        %v215 = vsub.s32 %v212, %v214
        %v216 = vrot.slane %v208, %v215
        %v218 = vsub.f32 %v198, %v216
        %v219 = vmul.f32 %v218, %v218
        %v221 = vcombine.high %v219, %v219
        %v223 = vsel %vm202, %v219, 0.0
        %v224 = vsel %vm202, %v221, 0.0
        %v225 = vadd.f32 %v223, %v224
        %226 = vadd.xlane.f32.xlu0 %v225
        %v227 = vpop.xlane.xlu0 %226
        %v228 = vmul.f32 %v227, 0.003921569
        %v229 = vrsqrt.pop %v228
        %v230 = vmul.f32 %v228, %v229
        %vm231 = vcmp.eq.f32.partialorder %v228, inf
        %v232 = vsel %vm231, %v228, %v230
        %vm233 = vcmp.eq.f32.partialorder %v228, 0.0
        %v234 = vand.u32 %v228, 2147483648
        %v235 = vsel %vm233, %v234, %v232
        %v236 = vld [vmem:[#allocation5] sm:$0xf]
        %v237 = vmul.f32 %v236, %v208
        %v238 = vmul.f32 %v236, %v235
        %240 = vrot.lane.b32.xlu0 %v238, 127
        %v241 = vpop.permute.xlu0 %240
        %v243 = vadd.f32 %v237, %v241
        %245 = vrot.lane.b32.xlu0 %v236, 126
        %v246 = vpop.permute.xlu0 %245
        %v248 = vadd.f32 %v243, %v246
        %v249 = vxor.u32 %v248, 2147483648
        %v250 = vmul.f32 %v249, 1.442695
        %v251 = vpow.pop %v250
        %v252 = vadd.f32 %v251, 1.0
        %v253 = vrcp.pop %v252
        %v254 = vmul.f32 1.0, %v253
        %256 = vset.pattern.permute.xlu0 0
        %257 = vperm.xlu0 %256, %v254
        %v258 = vpop.permute.xlu0 %257
        %v260 = vunpack.c.l.s4 839922192
        %v261 = vunpack.c.0.s8 %v260
        %v262 = vlaneseq
        %v263 = vshrl.u32 %v262, 7
        %v264 = vsub.s32 %v261, %v263
        %v265 = vrot.slane %v258, %v264
        %v267 = vmul.f32 %v198, %v265
        %268 = vst [vmem:[%s197] sm:$0xff] %v267
        %s269 = sand.u32 %s96, 1
        %s270 = scalar_lea.sflag [#allocation4], %s269
        %s271 = sand.u32 %s96, 1
        %s272 = smul.addr %s271, 8
        %s273 = scalar_lea.vmem [#allocation7], %s272
        // Predicated region
        $region37: #{tpu_custom_call.1} parent=27 // pred_check
          %p274 = pneg %p106
        $region38: #{tpu_custom_call.1} parent=27 // pred_check_branch
          %276 = sbr.rel (%p274) target = $region40
        $region39: #{tpu_custom_call.1} parent=27 // pred_region
          %s278 = ssub.s32 128, 128
          %279 = vsyncadd %s270, %s278
          %s280 = smul.addr %s24, 2
          %s281 = smul.addr %s25, 2
          %s282 = sadd.s32 %s280, %s281
          %s283 = smul.addr %s282, 64
          %s284 = scalar_lea.hbm %s2, %s283
          %s286 = sshll.u32 %s273, 4
          %s287 = int_to_ptr.vmem [resolvable:$true] %s286
          %289 = dma.vmem_to_hbm [thread:$0]  %s287, 128, %s284, %s270
        $region40: #{tpu_custom_call.1} parent=27 // pred_fallthru
          _
      $region28: #{tpu_custom_call.1} parent=5 // pred_fallthru
        _
      %p290 = scmp.le.s32.totalorder 2, %s15
      // Predicated region
      $region41: #{tpu_custom_call.1} parent=5 // pred_check
        %p291 = pneg %p290
      $region42: #{tpu_custom_call.1} parent=5 // pred_check_branch
        %293 = sbr.rel (%p291) target = $region44
      $region43: #{tpu_custom_call.1} parent=5 // pred_region
        %s294 = ssub.s32 %s15, 2
        // Predicated region
        $region45: #{tpu_custom_call.1} parent=43 // pred_check
          %p295 = pneg %p112
        $region46: #{tpu_custom_call.1} parent=43 // pred_check_branch
          %297 = sbr.rel (%p295) target = $region48
        $region47: #{tpu_custom_call.1} parent=43 // pred_region
          %s298 = sand.u32 %s97, 1
          %s299 = scalar_lea.sflag [#allocation4], %s298
          %s300 = sand.u32 %s97, 1
          %s301 = smul.addr %s300, 8
          %s302 = scalar_lea.vmem [#allocation7], %s301
          %303 = dma.done %s299, 128
        $region48: #{tpu_custom_call.1} parent=43 // pred_fallthru
          _
      $region44: #{tpu_custom_call.1} parent=5 // pred_fallthru
        _
    $region6: #{tpu_custom_call.1} parent=1 // loop_footer
      %s19 = sadd.s32 1, %s15
    $region7: #{tpu_custom_call.1} parent=1 // loop_footer_branch
      %14 = sbr.rel target = $region3
    $region8: #{tpu_custom_call.1} parent=1 // loop_exit
      _
    %304 = vsyncpa [#allocation3], 1
    %s305 = scalar_lea.sflag [#allocation3], 1
    %306 = vsyncpa %s305, 1
    %307 = vsyncpa [#allocation6], 1
    %308 = vsyncpa [#allocation4], 1
    %s309 = scalar_lea.sflag [#allocation4], 1
    %310 = vsyncpa %s309, 1

</llo_original>
